<compile_context>
chip_gen: v7x
topology: tpu7x:2x2x1
jax: 0.10.0
libtpu: 0.0.40
codegen_flags: <defaults>
</compile_context>

<pallas_src>
import jax
import jax.numpy as jnp
from jax.experimental import pallas as pl
from jax.experimental.pallas import tpu as pltpu

KSIZE = 3
PAD = (KSIZE - 1) // 2 + 1  # = 2 for kernel_size=3 (ReflectionPad1d(2))


# ----------------------------------------------------------------------------
# Pallas kernel: full lifting scheme forward for one batch element per grid step
#   c = x_even + U(x_odd)
#   d = x_odd  - P(c)
# where Operator = ReflectionPad1d(2) -> Conv1d(k=3) -> LeakyReLU(0.01)
#                  -> Dropout(0.0, no-op) -> Conv1d(k=3) -> Tanh
# ----------------------------------------------------------------------------
def lifting_kernel(xe_ref, xo_ref,
                   uw1_ref, ub1_ref, uw2_ref, ub2_ref,
                   pw1_ref, pb1_ref, pw2_ref, pb2_ref,
                   c_ref, d_ref, pad_ref):
    """Block layouts:
      xe/xo/c/d : (1, C, Lh)   channels on sublanes, length on lanes (NCL)
      w*        : (C, 3*C)     taps fused into the contraction dim
      b*        : (C, 1)       lane-broadcast columns
      pad_ref   : (C, Lh + 4)  VMEM scratch for the reflection-padded signal
    """
    C = xe_ref.shape[1]
    Lh = xe_ref.shape[2]
    n1 = Lh + 2  # conv1 output length

    def operator(x, w1_ref, b1_ref, w2_ref, b2_ref):
        # ReflectionPad1d(2): [x2, x1, x0 .. x_{Lh-1}, x_{Lh-2}, x_{Lh-3}]
        # interior + 4 boundary columns written into the VMEM scratch.
        pad_ref[:, 2:Lh + 2] = x
        pad_ref[:, 0:1] = x[:, 2:3]
        pad_ref[:, 1:2] = x[:, 1:2]
        pad_ref[:, Lh + 2:Lh + 3] = x[:, Lh - 2:Lh - 1]
        pad_ref[:, Lh + 3:Lh + 4] = x[:, Lh - 3:Lh - 2]

        # conv1: fuse the 3 taps into one matmul with K = 3*C.
        x1 = jnp.concatenate(
            [pad_ref[:, 0:n1], pad_ref[:, 1:n1 + 1], pad_ref[:, 2:n1 + 2]],
            axis=0)                                                # (3C, Lh+2)
        h = jnp.dot(w1_ref[...], x1,
                    preferred_element_type=jnp.float32) + b1_ref[...]
        h = jnp.where(h > 0, h, 0.01 * h)                          # LeakyReLU(0.01)
        # nn.Dropout(p=0.0) is a no-op.

        # conv2: fused taps again (pad of 2 covers both convs: Lh+4 -> Lh+2 -> Lh).
        x2 = jnp.concatenate(
            [h[:, 0:Lh], h[:, 1:Lh + 1], h[:, 2:Lh + 2]], axis=0)  # (3C, Lh)
        y = jnp.dot(w2_ref[...], x2,
                    preferred_element_type=jnp.float32) + b2_ref[...]
        return jnp.tanh(y)

    xe = xe_ref[0].astype(jnp.float32)        # (C, Lh)
    xo = xo_ref[0].astype(jnp.float32)        # (C, Lh)

    c = xe + operator(xo, uw1_ref, ub1_ref, uw2_ref, ub2_ref)
    d = xo - operator(c, pw1_ref, pb1_ref, pw2_ref, pb2_ref)

    c_ref[0] = c.astype(c_ref.dtype)
    d_ref[0] = d.astype(d_ref.dtype)


# ----------------------------------------------------------------------------
# Wrapper: splitting (strided slice only, no transposes) + weight repacking in
# plain JAX; the hot path is a batch-gridded, pipelined Pallas kernel.
# ----------------------------------------------------------------------------
def lifting_scheme(x, params):
    """x: (B, C, L) NCL; returns (c, d) each (B, C, L//2) like the torch module."""
    B, C, L = x.shape
    if L % 2 != 0:
        raise ValueError(f"L must be even, got {L}")
    Lh = L // 2
    if Lh < 3:
        raise ValueError(f"ReflectionPad1d(2) requires L//2 >= 3, got L//2={Lh}")

    # Splitting: strided slices only; kernel keeps NCL layout so no transposes
    # are needed on input or output.
    x_even = x[:, :, 0::2]                       # (B, C, Lh)
    x_odd = x[:, :, 1::2]                        # (B, C, Lh)

    # Re-pack conv weights: torch (C_out, C_in, K) -> (C_out, K*C_in) so the three
    # taps become one contraction of depth 3*C; biases as (C, 1) columns.
    def flat_w(w):
        return jnp.transpose(w, (0, 2, 1)).reshape(C, KSIZE * C)

    def col_b(b):
        return b.reshape(C, 1)

    weights = (flat_w(params["U_w1"]), col_b(params["U_b1"]),
               flat_w(params["U_w2"]), col_b(params["U_b2"]),
               flat_w(params["P_w1"]), col_b(params["P_b1"]),
               flat_w(params["P_w2"]), col_b(params["P_b2"]))

    xspec = pl.BlockSpec((1, C, Lh), lambda b: (b, 0, 0))
    # Constant index_maps -> weights/biases stay resident in VMEM across grid steps.
    wspec = pl.BlockSpec((C, KSIZE * C), lambda b: (0, 0))
    bspec = pl.BlockSpec((C, 1), lambda b: (0, 0))

    # Cost hint for XLA scheduling around the custom call.
    conv_flops = 2 * C * C * KSIZE * ((Lh + 2) + Lh)      # per operator, per batch
    flops = 2 * B * conv_flops
    transcendentals = 2 * B * C * Lh                      # two tanh passes
    bytes_accessed = 4 * (4 * B * C * Lh) + 4 * sum(int(w.size) for w in weights)
    cost = pl.CostEstimate(flops=flops, transcendentals=transcendentals,
                           bytes_accessed=bytes_accessed)

    # VMEM sizing: double-buffered in/out blocks + pad scratch + stacked-tap
    # temporaries + weights, with headroom; clamped to v7x's 64 MiB physical VMEM.
    blk = C * Lh * 4
    est = (8 * blk                                  # xe/xo/c/d double-buffered
           + C * (Lh + 4) * 4                       # reflection-pad scratch
           + 10 * 3 * C * (Lh + 4) * 4              # stacked-tap / conv temporaries
           + 4 * (KSIZE * C * C + C) * 4)           # weights + biases
    vmem_limit = int(min(64 * 2**20, max(16 * 2**20, 2 * est)))

    c, d = pl.pallas_call(
        lifting_kernel,
        grid=(B,),
        in_specs=[xspec, xspec,
                  wspec, bspec, wspec, bspec,
                  wspec, bspec, wspec, bspec],
        out_specs=(xspec, xspec),
        out_shape=(jax.ShapeDtypeStruct((B, C, Lh), x.dtype),
                   jax.ShapeDtypeStruct((B, C, Lh), x.dtype)),
        scratch_shapes=[pltpu.VMEM((C, Lh + 4), jnp.float32)],
        compiler_params=pltpu.CompilerParams(
            dimension_semantics=("parallel",),
            vmem_limit_bytes=vmem_limit),
        cost_estimate=cost,
    )(x_even, x_odd, *weights)
    return c, d


# ----------------------------------------------------------------------------
# Pure-JAX reference (uses lax.conv) for a correctness cross-check.
# ----------------------------------------------------------------------------
def _ref_operator(x_ncl, w1, b1, w2, b2):
    n = x_ncl.shape[-1]
    xp = jnp.concatenate(
        [x_ncl[:, :, 2:3], x_ncl[:, :, 1:2], x_ncl,
         x_ncl[:, :, n - 2:n - 1], x_ncl[:, :, n - 3:n - 2]], axis=-1)
    dn = ('NCH', 'OIH', 'NCH')
    h = jax.lax.conv_general_dilated(
        xp, w1, (1,), 'VALID', dimension_numbers=dn,
        precision=jax.lax.Precision.HIGHEST) + b1[None, :, None]
    h = jnp.where(h > 0, h, 0.01 * h)
    y = jax.lax.conv_general_dilated(
        h, w2, (1,), 'VALID', dimension_numbers=dn,
        precision=jax.lax.Precision.HIGHEST) + b2[None, :, None]
    return jnp.tanh(y)


def _ref_lifting(x, params):
    x_even = x[:, :, ::2]
    x_odd = x[:, :, 1::2]
    c = x_even + _ref_operator(x_odd, params["U_w1"], params["U_b1"],
                               params["U_w2"], params["U_b2"])
    d = x_odd - _ref_operator(c, params["P_w1"], params["P_b1"],
                              params["P_w2"], params["P_b2"])
    return c, d


# ----------------------------------------------------------------------------
if __name__ == "__main__":
    B, C, L = 2, 4, 16  # small shapes; L even, L//2 >= 3 (needed by reflection pad 2)

    key = jax.random.PRNGKey(0)
    keys = jax.random.split(key, 9)

    x = jax.random.normal(keys[0], (B, C, L), dtype=jnp.float32)

    def conv_w(k):
        return 0.2 * jax.random.normal(k, (C, C, KSIZE), dtype=jnp.float32)

    def conv_b(k):
        return 0.1 * jax.random.normal(k, (C,), dtype=jnp.float32)

    params = {
        "U_w1": conv_w(keys[1]), "U_b1": conv_b(keys[2]),
        "U_w2": conv_w(keys[3]), "U_b2": conv_b(keys[4]),
        "P_w1": conv_w(keys[5]), "P_b1": conv_b(keys[6]),
        "P_w2": conv_w(keys[7]), "P_b2": conv_b(keys[8]),
    }

    c, d = lifting_scheme(x, params)
    jax.block_until_ready((c, d))

    c_ref, d_ref = _ref_lifting(x, params)
    assert c.shape == (B, C, L // 2) and d.shape == (B, C, L // 2)
    assert jnp.allclose(c, c_ref, atol=1e-4, rtol=1e-4)
    assert jnp.allclose(d, d_ref, atol=1e-4, rtol=1e-4)

    print("KERNEL_OK")
</pallas_src>

<mosaic_0001>
module attributes {stable_mosaic.version = 11 : i64} {
  func.func @lifting_kernel(%arg0: i32, %arg1: memref<1x4x8xf32, #tpu.memory_space<vmem>>, %arg2: memref<1x4x8xf32, #tpu.memory_space<vmem>>, %arg3: memref<4x12xf32, #tpu.memory_space<vmem>>, %arg4: memref<4x1xf32, #tpu.memory_space<vmem>>, %arg5: memref<4x12xf32, #tpu.memory_space<vmem>>, %arg6: memref<4x1xf32, #tpu.memory_space<vmem>>, %arg7: memref<4x12xf32, #tpu.memory_space<vmem>>, %arg8: memref<4x1xf32, #tpu.memory_space<vmem>>, %arg9: memref<4x12xf32, #tpu.memory_space<vmem>>, %arg10: memref<4x1xf32, #tpu.memory_space<vmem>>, %arg11: memref<1x4x8xf32, #tpu.memory_space<vmem>>, %arg12: memref<1x4x8xf32, #tpu.memory_space<vmem>>, %arg13: memref<4x12xf32, #tpu.memory_space<vmem>>) attributes {dimension_semantics = [#tpu.dimension_semantics<parallel>], iteration_bounds = array<i64: 2>, scalar_prefetch = 0 : i64, scratch_operands = 1 : i64, tpu.core_type = #tpu.core_type<tc>, window_params = [{transform_indices = @transform_0, window_bounds = array<i64: 1, 4, 8>}, {transform_indices = @transform_1, window_bounds = array<i64: 1, 4, 8>}, {pipeline_mode = #tpu.pipeline_mode<synchronous>, transform_indices = @transform_2, window_bounds = array<i64: 4, 12>}, {pipeline_mode = #tpu.pipeline_mode<synchronous>, transform_indices = @transform_3, window_bounds = array<i64: 4, 1>}, {pipeline_mode = #tpu.pipeline_mode<synchronous>, transform_indices = @transform_4, window_bounds = array<i64: 4, 12>}, {pipeline_mode = #tpu.pipeline_mode<synchronous>, transform_indices = @transform_5, window_bounds = array<i64: 4, 1>}, {pipeline_mode = #tpu.pipeline_mode<synchronous>, transform_indices = @transform_6, window_bounds = array<i64: 4, 12>}, {pipeline_mode = #tpu.pipeline_mode<synchronous>, transform_indices = @transform_7, window_bounds = array<i64: 4, 1>}, {pipeline_mode = #tpu.pipeline_mode<synchronous>, transform_indices = @transform_8, window_bounds = array<i64: 4, 12>}, {pipeline_mode = #tpu.pipeline_mode<synchronous>, transform_indices = @transform_9, window_bounds = array<i64: 4, 1>}, {transform_indices = @transform_10, window_bounds = array<i64: 1, 4, 8>}, {transform_indices = @transform_11, window_bounds = array<i64: 1, 4, 8>}]} {
    %c0 = arith.constant 0 : index
    %c0_0 = arith.constant 0 : index
    %c0_1 = arith.constant 0 : index
    %0 = vector.load %arg1[%c0, %c0_0, %c0_1] : memref<1x4x8xf32, #tpu.memory_space<vmem>>, vector<1x4x8xf32>
    %1 = vector.shape_cast %0 : vector<1x4x8xf32> to vector<4x8xf32>
    %c0_2 = arith.constant 0 : index
    %c0_3 = arith.constant 0 : index
    %c0_4 = arith.constant 0 : index
    %2 = vector.load %arg2[%c0_2, %c0_3, %c0_4] : memref<1x4x8xf32, #tpu.memory_space<vmem>>, vector<1x4x8xf32>
    %3 = vector.shape_cast %2 : vector<1x4x8xf32> to vector<4x8xf32>
    %c0_5 = arith.constant 0 : index
    %c2 = arith.constant 2 : index
    %4 = vector.load %arg13[%c0_5, %c2] : memref<4x12xf32, #tpu.memory_space<vmem>>, vector<4x8xf32>
    tpu.vector_store %arg13[%c0_5, %c2], %3 {strides = array<i32>} : memref<4x12xf32, #tpu.memory_space<vmem>>, vector<4x8xf32>,
    %5 = vector.extract_strided_slice %3 {offsets = [0, 2], sizes = [4, 1], strides = [1, 1]} : vector<4x8xf32> to vector<4x1xf32>
    %c0_6 = arith.constant 0 : index
    %c0_7 = arith.constant 0 : index
    %6 = vector.load %arg13[%c0_6, %c0_7] : memref<4x12xf32, #tpu.memory_space<vmem>>, vector<4x1xf32>
    tpu.vector_store %arg13[%c0_6, %c0_7], %5 {strides = array<i32>} : memref<4x12xf32, #tpu.memory_space<vmem>>, vector<4x1xf32>,
    %7 = vector.extract_strided_slice %3 {offsets = [0, 1], sizes = [4, 1], strides = [1, 1]} : vector<4x8xf32> to vector<4x1xf32>
    %c0_8 = arith.constant 0 : index
    %c1 = arith.constant 1 : index
    %8 = vector.load %arg13[%c0_8, %c1] : memref<4x12xf32, #tpu.memory_space<vmem>>, vector<4x1xf32>
    tpu.vector_store %arg13[%c0_8, %c1], %7 {strides = array<i32>} : memref<4x12xf32, #tpu.memory_space<vmem>>, vector<4x1xf32>,
    %9 = vector.extract_strided_slice %3 {offsets = [0, 6], sizes = [4, 1], strides = [1, 1]} : vector<4x8xf32> to vector<4x1xf32>
    %c0_9 = arith.constant 0 : index
    %c10 = arith.constant 10 : index
    %10 = vector.load %arg13[%c0_9, %c10] : memref<4x12xf32, #tpu.memory_space<vmem>>, vector<4x1xf32>
    tpu.vector_store %arg13[%c0_9, %c10], %9 {strides = array<i32>} : memref<4x12xf32, #tpu.memory_space<vmem>>, vector<4x1xf32>,
    %11 = vector.extract_strided_slice %3 {offsets = [0, 5], sizes = [4, 1], strides = [1, 1]} : vector<4x8xf32> to vector<4x1xf32>
    %c0_10 = arith.constant 0 : index
    %c11 = arith.constant 11 : index
    %12 = vector.load %arg13[%c0_10, %c11] : memref<4x12xf32, #tpu.memory_space<vmem>>, vector<4x1xf32>
    tpu.vector_store %arg13[%c0_10, %c11], %11 {strides = array<i32>} : memref<4x12xf32, #tpu.memory_space<vmem>>, vector<4x1xf32>,
    %c0_11 = arith.constant 0 : index
    %c0_12 = arith.constant 0 : index
    %13 = vector.load %arg13[%c0_11, %c0_12] : memref<4x12xf32, #tpu.memory_space<vmem>>, vector<4x10xf32>
    %c0_13 = arith.constant 0 : index
    %c1_14 = arith.constant 1 : index
    %14 = vector.load %arg13[%c0_13, %c1_14] : memref<4x12xf32, #tpu.memory_space<vmem>>, vector<4x10xf32>
    %c0_15 = arith.constant 0 : index
    %c2_16 = arith.constant 2 : index
    %15 = vector.load %arg13[%c0_15, %c2_16] : memref<4x12xf32, #tpu.memory_space<vmem>>, vector<4x10xf32>
    %16 = tpu.concatenate %13, %14, %15 in 0 : vector<4x10xf32>, vector<4x10xf32>, vector<4x10xf32> -> vector<12x10xf32>
    %c0_17 = arith.constant 0 : index
    %c0_18 = arith.constant 0 : index
    %17 = vector.load %arg3[%c0_17, %c0_18] : memref<4x12xf32, #tpu.memory_space<vmem>>, vector<4x12xf32>
    %cst = arith.constant dense<0.000000e+00> : vector<4x10xf32>
    %18 = tpu.matmul %17, %16, %cst {dimension_numbers = #tpu.dot_dimension_numbers<[1], [0], [0], [1], [0, 0, 1, 1], [], []>} : vector<4x12xf32>, vector<12x10xf32>, vector<4x10xf32> -> vector<4x10xf32>
    %c0_19 = arith.constant 0 : index
    %c0_20 = arith.constant 0 : index
    %19 = vector.load %arg4[%c0_19, %c0_20] : memref<4x1xf32, #tpu.memory_space<vmem>>, vector<4x1xf32>
    %20 = vector.broadcast %19 : vector<4x1xf32> to vector<4x10xf32>
    %21 = arith.addf %18, %20 : vector<4x10xf32>
    %cst_21 = arith.constant 0.000000e+00 : f32
    %22 = vector.broadcast %cst_21 : f32 to vector<4x10xf32>
    %23 = arith.cmpf ogt, %21, %22 : vector<4x10xf32>
    %cst_22 = arith.constant 0.00999999977 : f32
    %24 = vector.broadcast %cst_22 : f32 to vector<4x10xf32>
    %25 = arith.mulf %24, %21 : vector<4x10xf32>
    %26 = arith.select %23, %21, %25 : vector<4x10xi1>, vector<4x10xf32>
    %27 = vector.extract_strided_slice %26 {offsets = [0, 0], sizes = [4, 8], strides = [1, 1]} : vector<4x10xf32> to vector<4x8xf32>
    %28 = vector.extract_strided_slice %26 {offsets = [0, 1], sizes = [4, 8], strides = [1, 1]} : vector<4x10xf32> to vector<4x8xf32>
    %29 = vector.extract_strided_slice %26 {offsets = [0, 2], sizes = [4, 8], strides = [1, 1]} : vector<4x10xf32> to vector<4x8xf32>
    %30 = tpu.concatenate %27, %28, %29 in 0 : vector<4x8xf32>, vector<4x8xf32>, vector<4x8xf32> -> vector<12x8xf32>
    %c0_23 = arith.constant 0 : index
    %c0_24 = arith.constant 0 : index
    %31 = vector.load %arg5[%c0_23, %c0_24] : memref<4x12xf32, #tpu.memory_space<vmem>>, vector<4x12xf32>
    %cst_25 = arith.constant dense<0.000000e+00> : vector<4x8xf32>
    %32 = tpu.matmul %31, %30, %cst_25 {dimension_numbers = #tpu.dot_dimension_numbers<[1], [0], [0], [1], [0, 0, 1, 1], [], []>} : vector<4x12xf32>, vector<12x8xf32>, vector<4x8xf32> -> vector<4x8xf32>
    %c0_26 = arith.constant 0 : index
    %c0_27 = arith.constant 0 : index
    %33 = vector.load %arg6[%c0_26, %c0_27] : memref<4x1xf32, #tpu.memory_space<vmem>>, vector<4x1xf32>
    %34 = vector.broadcast %33 : vector<4x1xf32> to vector<4x8xf32>
    %35 = arith.addf %32, %34 : vector<4x8xf32>
    %36 = math.tanh %35 : vector<4x8xf32>
    %37 = arith.addf %1, %36 : vector<4x8xf32>
    %c0_28 = arith.constant 0 : index
    %c2_29 = arith.constant 2 : index
    %38 = vector.load %arg13[%c0_28, %c2_29] : memref<4x12xf32, #tpu.memory_space<vmem>>, vector<4x8xf32>
    tpu.vector_store %arg13[%c0_28, %c2_29], %37 {strides = array<i32>} : memref<4x12xf32, #tpu.memory_space<vmem>>, vector<4x8xf32>,
    %39 = vector.extract_strided_slice %37 {offsets = [0, 2], sizes = [4, 1], strides = [1, 1]} : vector<4x8xf32> to vector<4x1xf32>
    %c0_30 = arith.constant 0 : index
    %c0_31 = arith.constant 0 : index
    %40 = vector.load %arg13[%c0_30, %c0_31] : memref<4x12xf32, #tpu.memory_space<vmem>>, vector<4x1xf32>
    tpu.vector_store %arg13[%c0_30, %c0_31], %39 {strides = array<i32>} : memref<4x12xf32, #tpu.memory_space<vmem>>, vector<4x1xf32>,
    %41 = vector.extract_strided_slice %37 {offsets = [0, 1], sizes = [4, 1], strides = [1, 1]} : vector<4x8xf32> to vector<4x1xf32>
    %c0_32 = arith.constant 0 : index
    %c1_33 = arith.constant 1 : index
    %42 = vector.load %arg13[%c0_32, %c1_33] : memref<4x12xf32, #tpu.memory_space<vmem>>, vector<4x1xf32>
    tpu.vector_store %arg13[%c0_32, %c1_33], %41 {strides = array<i32>} : memref<4x12xf32, #tpu.memory_space<vmem>>, vector<4x1xf32>,
    %43 = vector.extract_strided_slice %37 {offsets = [0, 6], sizes = [4, 1], strides = [1, 1]} : vector<4x8xf32> to vector<4x1xf32>
    %c0_34 = arith.constant 0 : index
    %c10_35 = arith.constant 10 : index
    %44 = vector.load %arg13[%c0_34, %c10_35] : memref<4x12xf32, #tpu.memory_space<vmem>>, vector<4x1xf32>
    tpu.vector_store %arg13[%c0_34, %c10_35], %43 {strides = array<i32>} : memref<4x12xf32, #tpu.memory_space<vmem>>, vector<4x1xf32>,
    %45 = vector.extract_strided_slice %37 {offsets = [0, 5], sizes = [4, 1], strides = [1, 1]} : vector<4x8xf32> to vector<4x1xf32>
    %c0_36 = arith.constant 0 : index
    %c11_37 = arith.constant 11 : index
    %46 = vector.load %arg13[%c0_36, %c11_37] : memref<4x12xf32, #tpu.memory_space<vmem>>, vector<4x1xf32>
    tpu.vector_store %arg13[%c0_36, %c11_37], %45 {strides = array<i32>} : memref<4x12xf32, #tpu.memory_space<vmem>>, vector<4x1xf32>,
    %c0_38 = arith.constant 0 : index
    %c0_39 = arith.constant 0 : index
    %47 = vector.load %arg13[%c0_38, %c0_39] : memref<4x12xf32, #tpu.memory_space<vmem>>, vector<4x10xf32>
    %c0_40 = arith.constant 0 : index
    %c1_41 = arith.constant 1 : index
    %48 = vector.load %arg13[%c0_40, %c1_41] : memref<4x12xf32, #tpu.memory_space<vmem>>, vector<4x10xf32>
    %c0_42 = arith.constant 0 : index
    %c2_43 = arith.constant 2 : index
    %49 = vector.load %arg13[%c0_42, %c2_43] : memref<4x12xf32, #tpu.memory_space<vmem>>, vector<4x10xf32>
    %50 = tpu.concatenate %47, %48, %49 in 0 : vector<4x10xf32>, vector<4x10xf32>, vector<4x10xf32> -> vector<12x10xf32>
    %c0_44 = arith.constant 0 : index
    %c0_45 = arith.constant 0 : index
    %51 = vector.load %arg7[%c0_44, %c0_45] : memref<4x12xf32, #tpu.memory_space<vmem>>, vector<4x12xf32>
    %cst_46 = arith.constant dense<0.000000e+00> : vector<4x10xf32>
    %52 = tpu.matmul %51, %50, %cst_46 {dimension_numbers = #tpu.dot_dimension_numbers<[1], [0], [0], [1], [0, 0, 1, 1], [], []>} : vector<4x12xf32>, vector<12x10xf32>, vector<4x10xf32> -> vector<4x10xf32>
    %c0_47 = arith.constant 0 : index
    %c0_48 = arith.constant 0 : index
    %53 = vector.load %arg8[%c0_47, %c0_48] : memref<4x1xf32, #tpu.memory_space<vmem>>, vector<4x1xf32>
    %54 = vector.broadcast %53 : vector<4x1xf32> to vector<4x10xf32>
    %55 = arith.addf %52, %54 : vector<4x10xf32>
    %cst_49 = arith.constant 0.000000e+00 : f32
    %56 = vector.broadcast %cst_49 : f32 to vector<4x10xf32>
    %57 = arith.cmpf ogt, %55, %56 : vector<4x10xf32>
    %cst_50 = arith.constant 0.00999999977 : f32
    %58 = vector.broadcast %cst_50 : f32 to vector<4x10xf32>
    %59 = arith.mulf %58, %55 : vector<4x10xf32>
    %60 = arith.select %57, %55, %59 : vector<4x10xi1>, vector<4x10xf32>
    %61 = vector.extract_strided_slice %60 {offsets = [0, 0], sizes = [4, 8], strides = [1, 1]} : vector<4x10xf32> to vector<4x8xf32>
    %62 = vector.extract_strided_slice %60 {offsets = [0, 1], sizes = [4, 8], strides = [1, 1]} : vector<4x10xf32> to vector<4x8xf32>
    %63 = vector.extract_strided_slice %60 {offsets = [0, 2], sizes = [4, 8], strides = [1, 1]} : vector<4x10xf32> to vector<4x8xf32>
    %64 = tpu.concatenate %61, %62, %63 in 0 : vector<4x8xf32>, vector<4x8xf32>, vector<4x8xf32> -> vector<12x8xf32>
    %c0_51 = arith.constant 0 : index
    %c0_52 = arith.constant 0 : index
    %65 = vector.load %arg9[%c0_51, %c0_52] : memref<4x12xf32, #tpu.memory_space<vmem>>, vector<4x12xf32>
    %cst_53 = arith.constant dense<0.000000e+00> : vector<4x8xf32>
    %66 = tpu.matmul %65, %64, %cst_53 {dimension_numbers = #tpu.dot_dimension_numbers<[1], [0], [0], [1], [0, 0, 1, 1], [], []>} : vector<4x12xf32>, vector<12x8xf32>, vector<4x8xf32> -> vector<4x8xf32>
    %c0_54 = arith.constant 0 : index
    %c0_55 = arith.constant 0 : index
    %67 = vector.load %arg10[%c0_54, %c0_55] : memref<4x1xf32, #tpu.memory_space<vmem>>, vector<4x1xf32>
    %68 = vector.broadcast %67 : vector<4x1xf32> to vector<4x8xf32>
    %69 = arith.addf %66, %68 : vector<4x8xf32>
    %70 = math.tanh %69 : vector<4x8xf32>
    %71 = arith.subf %3, %70 : vector<4x8xf32>
    %c0_56 = arith.constant 0 : index
    %c0_57 = arith.constant 0 : index
    %c0_58 = arith.constant 0 : index
    %72 = vector.load %arg11[%c0_56, %c0_57, %c0_58] : memref<1x4x8xf32, #tpu.memory_space<vmem>>, vector<1x4x8xf32>
    %73 = vector.shape_cast %72 : vector<1x4x8xf32> to vector<4x8xf32>
    %74 = vector.shape_cast %37 : vector<4x8xf32> to vector<1x4x8xf32>
    tpu.vector_store %arg11[%c0_56, %c0_57, %c0_58], %74 {strides = array<i32>} : memref<1x4x8xf32, #tpu.memory_space<vmem>>, vector<1x4x8xf32>,
    %c0_59 = arith.constant 0 : index
    %c0_60 = arith.constant 0 : index
    %c0_61 = arith.constant 0 : index
    %75 = vector.load %arg12[%c0_59, %c0_60, %c0_61] : memref<1x4x8xf32, #tpu.memory_space<vmem>>, vector<1x4x8xf32>
    %76 = vector.shape_cast %75 : vector<1x4x8xf32> to vector<4x8xf32>
    %77 = vector.shape_cast %71 : vector<4x8xf32> to vector<1x4x8xf32>
    tpu.vector_store %arg12[%c0_59, %c0_60, %c0_61], %77 {strides = array<i32>} : memref<1x4x8xf32, #tpu.memory_space<vmem>>, vector<1x4x8xf32>,
    return
  }
  func.func @transform_0(%arg0: i32) -> (i32, i32, i32) {
    %c0_i32 = arith.constant 0 : i32
    %c0_i32_0 = arith.constant 0 : i32
    %c0_i32_1 = arith.constant 0 : i32
    return %arg0, %c0_i32, %c0_i32_0 : i32, i32, i32
  }
  func.func @transform_1(%arg0: i32) -> (i32, i32, i32) {
    %c0_i32 = arith.constant 0 : i32
    %c0_i32_0 = arith.constant 0 : i32
    %c0_i32_1 = arith.constant 0 : i32
    return %arg0, %c0_i32, %c0_i32_0 : i32, i32, i32
  }
  func.func @transform_2(%arg0: i32) -> (i32, i32) {
    %c0_i32 = arith.constant 0 : i32
    %c0_i32_0 = arith.constant 0 : i32
    %c0_i32_1 = arith.constant 0 : i32
    return %c0_i32, %c0_i32_0 : i32, i32
  }
  func.func @transform_3(%arg0: i32) -> (i32, i32) {
    %c0_i32 = arith.constant 0 : i32
    %c0_i32_0 = arith.constant 0 : i32
    %c0_i32_1 = arith.constant 0 : i32
    return %c0_i32, %c0_i32_0 : i32, i32
  }
  func.func @transform_4(%arg0: i32) -> (i32, i32) {
    %c0_i32 = arith.constant 0 : i32
    %c0_i32_0 = arith.constant 0 : i32
    %c0_i32_1 = arith.constant 0 : i32
    return %c0_i32, %c0_i32_0 : i32, i32
  }
  func.func @transform_5(%arg0: i32) -> (i32, i32) {
    %c0_i32 = arith.constant 0 : i32
    %c0_i32_0 = arith.constant 0 : i32
    %c0_i32_1 = arith.constant 0 : i32
    return %c0_i32, %c0_i32_0 : i32, i32
  }
  func.func @transform_6(%arg0: i32) -> (i32, i32) {
    %c0_i32 = arith.constant 0 : i32
    %c0_i32_0 = arith.constant 0 : i32
    %c0_i32_1 = arith.constant 0 : i32
    return %c0_i32, %c0_i32_0 : i32, i32
  }
  func.func @transform_7(%arg0: i32) -> (i32, i32) {
    %c0_i32 = arith.constant 0 : i32
    %c0_i32_0 = arith.constant 0 : i32
    %c0_i32_1 = arith.constant 0 : i32
    return %c0_i32, %c0_i32_0 : i32, i32
  }
  func.func @transform_8(%arg0: i32) -> (i32, i32) {
    %c0_i32 = arith.constant 0 : i32
    %c0_i32_0 = arith.constant 0 : i32
    %c0_i32_1 = arith.constant 0 : i32
    return %c0_i32, %c0_i32_0 : i32, i32
  }
  func.func @transform_9(%arg0: i32) -> (i32, i32) {
    %c0_i32 = arith.constant 0 : i32
    %c0_i32_0 = arith.constant 0 : i32
    %c0_i32_1 = arith.constant 0 : i32
    return %c0_i32, %c0_i32_0 : i32, i32
  }
  func.func @transform_10(%arg0: i32) -> (i32, i32, i32) {
    %c0_i32 = arith.constant 0 : i32
    %c0_i32_0 = arith.constant 0 : i32
    %c0_i32_1 = arith.constant 0 : i32
    return %arg0, %c0_i32, %c0_i32_0 : i32, i32, i32
  }
  func.func @transform_11(%arg0: i32) -> (i32, i32, i32) {
    %c0_i32 = arith.constant 0 : i32
    %c0_i32_0 = arith.constant 0 : i32
    %c0_i32_1 = arith.constant 0 : i32
    return %arg0, %c0_i32, %c0_i32_0 : i32, i32, i32
  }
}

</mosaic_0001>

<llo_original>
// kernel: tpu_custom_call.1
$region0: #{tpu_custom_call.1}
  #allocation0 [shape = 'u32[]', space=smem, size = 0x4, offset = 0x4, fixed_abs, tag = 'smem constant byte address 0x4 - core index']
  #allocation1 [shape = 'u32[144,128]{1,0:T(1,128)}', space=vmem, size = 0x12000, scoped, tag = 'internal scratch']
  #allocation2 [shape = 'f32[4,12]{1,0:T(4,128)}', space=vmem, size = 0x800, scoped, tag = 'scratch operand']
  %s0 = inlined_call_operand.vmem [shape: f32[2,4,8], index: 0, kind: input, shape index: {}]
  %s1 = inlined_call_operand.vmem [shape: f32[2,4,8], index: 1, kind: input, shape index: {}]
  %s2 = inlined_call_operand.vmem [shape: f32[4,12], index: 2, kind: input, shape index: {}]
  %s3 = inlined_call_operand.vmem [shape: f32[4,1], index: 3, kind: input, shape index: {}]
  %s4 = inlined_call_operand.vmem [shape: f32[4,12], index: 4, kind: input, shape index: {}]
  %s5 = inlined_call_operand.vmem [shape: f32[4,1], index: 5, kind: input, shape index: {}]
  %s6 = inlined_call_operand.vmem [shape: f32[4,12], index: 6, kind: input, shape index: {}]
  %s7 = inlined_call_operand.vmem [shape: f32[4,1], index: 7, kind: input, shape index: {}]
  %s8 = inlined_call_operand.vmem [shape: f32[4,12], index: 8, kind: input, shape index: {}]
  %s9 = inlined_call_operand.vmem [shape: f32[4,1], index: 9, kind: input, shape index: {}]
  %s10 = inlined_call_operand.hbm [shape: f32[2,4,8], index: 10, kind: output, shape index: {0}]
  %s11 = inlined_call_operand.hbm [shape: f32[2,4,8], index: 11, kind: output, shape index: {1}]
  %12 = xla_tuple %s10, %s11
  %s13 = sld [smem:[#allocation0]]
  $region81: #{tpu_custom_call.1} parent=0
    _
  %s15 = ssub.s32 1, %s13
  %s16 = scalar_select 0, %s15, %s13
  $region1: #{tpu_custom_call.1} parent=0
    #allocation3 [shape = 'u8[4096]{0}', space=vmem, size = 0x1000, scoped, tag = 'output window, operand 0']
    #allocation4 [shape = 's32[2]{0}', space=sflag, size = 0x8, scoped, tag = 'scoped memory for tpu_custom_call.1']
    #allocation5 [shape = 'u8[4096]{0}', space=vmem, size = 0x1000, scoped, tag = 'output window, operand 1']
    #allocation6 [shape = 's32[2]{0}', space=sflag, size = 0x8, scoped, tag = 'scoped memory for tpu_custom_call.1']
    %17 = vsyncpa [#allocation4], 0
    %s18 = scalar_lea.sflag [#allocation4], 1
    %19 = vsyncpa %s18, 0
    %20 = vsyncpa [#allocation6], 0
    %s21 = scalar_lea.sflag [#allocation6], 1
    %22 = vsyncpa %s21, 0
    loop: start=0, step=1, limit=4
    $region2: #{tpu_custom_call.1} parent=1 // loop_pre_header
      _
    $region3: #{tpu_custom_call.1} parent=1 // loop_header
      %s24 = sphi 0, %s28
      %p25 = scmp.ge.s32.totalorder %s24, 4
      %s34 = sphi 0, %s36
      %s37 = sphi 0, %s34
      %s38 = sphi 0, %s37
      %s54 = sphi 0, %s38
      %s60 = sphi 0, %s62
      %s63 = sphi 0, %s60
      %s64 = sphi 0, %s63
      %s80 = sphi 0, %s64
      %s84 = sphi 0, %s84
      %s86 = sphi 0, %s84
      %s87 = sphi 0, %s86
      %s101 = sphi 0, %s87
      %s105 = sphi 0, %s105
      %s107 = sphi 0, %s105
      %s108 = sphi 0, %s107
      %s122 = sphi 0, %s108
      %s126 = sphi 0, %s126
      %s128 = sphi 0, %s126
      %s129 = sphi 0, %s128
      %s143 = sphi 0, %s129
      %s147 = sphi 0, %s147
      %s149 = sphi 0, %s147
      %s150 = sphi 0, %s149
      %s164 = sphi 0, %s150
      %s168 = sphi 0, %s168
      %s170 = sphi 0, %s168
      %s171 = sphi 0, %s170
      %s185 = sphi 0, %s171
      %s189 = sphi 0, %s189
      %s191 = sphi 0, %s189
      %s192 = sphi 0, %s191
      %s206 = sphi 0, %s192
      %s210 = sphi 0, %s210
      %s212 = sphi 0, %s210
      %s213 = sphi 0, %s212
      %s227 = sphi 0, %s213
      %s231 = sphi 0, %s231
      %s233 = sphi 0, %s231
      %s234 = sphi 0, %s233
      %s248 = sphi 0, %s234
      %s254 = sphi 0, %s256
      %s257 = sphi 0, %s254
      %s258 = sphi 0, %s257
      %s274 = sphi 0, %s258
      %s280 = sphi 0, %s282
      %s283 = sphi 0, %s280
      %s284 = sphi 0, %s283
      %s300 = sphi 0, %s284
    $region4: #{tpu_custom_call.1} parent=1 // loop_header_branch
      %27 = sbr.rel (%p25) target = $region8
    $region5: #{tpu_custom_call.1} parent=1 // loop_body
      %s29 = ssub.s32 %s24, 1
      %s30 = ssub.s32 %s24, 2
      %s31 = sadd.s32 %s24, 1
      %s32 = ssub.s32 %s24, %s31
      %p33 = scmp.eq.s32.totalorder %s32, 0
      %s35 = sadd.s32 %s34, 1
      %s36 = scalar_select %p33, %s34, %s35
      %p39 = pneg %p33
      %p40 = scmp.eq.s32.totalorder %s24, 1
      %p41 = por %p39, %p40
      %p42 = scmp.ne.s32.totalorder %s34, %s37
      %p43 = scmp.eq.s32.totalorder %s24, 0
      %p44 = por %p42, %p43
      %p45 = scmp.ne.s32.totalorder %s34, %s37
      %p46 = scmp.eq.s32.totalorder %s29, 1
      %p47 = por %p45, %p46
      %p48 = scmp.ne.s32.totalorder %s37, %s38
      %p49 = scmp.eq.s32.totalorder %s29, 0
      %p50 = por %p48, %p49
      %p51 = scmp.ne.s32.totalorder %s37, %s38
      %p52 = scmp.eq.s32.totalorder %s30, 1
      %p53 = por %p51, %p52
      %p55 = scmp.ne.s32.totalorder %s38, %s54
      %p56 = scmp.eq.s32.totalorder %s30, 0
      %p57 = por %p55, %p56
      %s58 = ssub.s32 %s24, %s31
      %p59 = scmp.eq.s32.totalorder %s58, 0
      %s61 = sadd.s32 %s60, 1
      %s62 = scalar_select %p59, %s60, %s61
      %p65 = pneg %p59
      %p66 = scmp.eq.s32.totalorder %s24, 1
      %p67 = por %p65, %p66
      %p68 = scmp.ne.s32.totalorder %s60, %s63
      %p69 = scmp.eq.s32.totalorder %s24, 0
      %p70 = por %p68, %p69
      %p71 = scmp.ne.s32.totalorder %s60, %s63
      %p72 = scmp.eq.s32.totalorder %s29, 1
      %p73 = por %p71, %p72
      %p74 = scmp.ne.s32.totalorder %s63, %s64
      %p75 = scmp.eq.s32.totalorder %s29, 0
      %p76 = por %p74, %p75
      %p77 = scmp.ne.s32.totalorder %s63, %s64
      %p78 = scmp.eq.s32.totalorder %s30, 1
      %p79 = por %p77, %p78
      %p81 = scmp.ne.s32.totalorder %s64, %s80
      %p82 = scmp.eq.s32.totalorder %s30, 0
      %p83 = por %p81, %p82
      %s85 = sadd.s32 %s84, 1
      %p88 = scmp.eq.s32.totalorder %s24, 1
      %p89 = scmp.ne.s32.totalorder %s84, %s86
      %p90 = scmp.eq.s32.totalorder %s24, 0
      %p91 = por %p89, %p90
      %p92 = scmp.ne.s32.totalorder %s84, %s86
      %p93 = scmp.eq.s32.totalorder %s29, 1
      %p94 = por %p92, %p93
      %p95 = scmp.ne.s32.totalorder %s86, %s87
      %p96 = scmp.eq.s32.totalorder %s29, 0
      %p97 = por %p95, %p96
      %p98 = scmp.ne.s32.totalorder %s86, %s87
      %p99 = scmp.eq.s32.totalorder %s30, 1
      %p100 = por %p98, %p99
      %p102 = scmp.ne.s32.totalorder %s87, %s101
      %p103 = scmp.eq.s32.totalorder %s30, 0
      %p104 = por %p102, %p103
      %s106 = sadd.s32 %s105, 1
      %p109 = scmp.eq.s32.totalorder %s24, 1
      %p110 = scmp.ne.s32.totalorder %s105, %s107
      %p111 = scmp.eq.s32.totalorder %s24, 0
      %p112 = por %p110, %p111
      %p113 = scmp.ne.s32.totalorder %s105, %s107
      %p114 = scmp.eq.s32.totalorder %s29, 1
      %p115 = por %p113, %p114
      %p116 = scmp.ne.s32.totalorder %s107, %s108
      %p117 = scmp.eq.s32.totalorder %s29, 0
      %p118 = por %p116, %p117
      %p119 = scmp.ne.s32.totalorder %s107, %s108
      %p120 = scmp.eq.s32.totalorder %s30, 1
      %p121 = por %p119, %p120
      %p123 = scmp.ne.s32.totalorder %s108, %s122
      %p124 = scmp.eq.s32.totalorder %s30, 0
      %p125 = por %p123, %p124
      %s127 = sadd.s32 %s126, 1
      %p130 = scmp.eq.s32.totalorder %s24, 1
      %p131 = scmp.ne.s32.totalorder %s126, %s128
      %p132 = scmp.eq.s32.totalorder %s24, 0
      %p133 = por %p131, %p132
      %p134 = scmp.ne.s32.totalorder %s126, %s128
      %p135 = scmp.eq.s32.totalorder %s29, 1
      %p136 = por %p134, %p135
      %p137 = scmp.ne.s32.totalorder %s128, %s129
      %p138 = scmp.eq.s32.totalorder %s29, 0
      %p139 = por %p137, %p138
      %p140 = scmp.ne.s32.totalorder %s128, %s129
      %p141 = scmp.eq.s32.totalorder %s30, 1
      %p142 = por %p140, %p141
      %p144 = scmp.ne.s32.totalorder %s129, %s143
      %p145 = scmp.eq.s32.totalorder %s30, 0
      %p146 = por %p144, %p145
      %s148 = sadd.s32 %s147, 1
      %p151 = scmp.eq.s32.totalorder %s24, 1
      %p152 = scmp.ne.s32.totalorder %s147, %s149
      %p153 = scmp.eq.s32.totalorder %s24, 0
      %p154 = por %p152, %p153
      %p155 = scmp.ne.s32.totalorder %s147, %s149
      %p156 = scmp.eq.s32.totalorder %s29, 1
      %p157 = por %p155, %p156
      %p158 = scmp.ne.s32.totalorder %s149, %s150
      %p159 = scmp.eq.s32.totalorder %s29, 0
      %p160 = por %p158, %p159
      %p161 = scmp.ne.s32.totalorder %s149, %s150
      %p162 = scmp.eq.s32.totalorder %s30, 1
      %p163 = por %p161, %p162
      %p165 = scmp.ne.s32.totalorder %s150, %s164
      %p166 = scmp.eq.s32.totalorder %s30, 0
      %p167 = por %p165, %p166
      %s169 = sadd.s32 %s168, 1
      %p172 = scmp.eq.s32.totalorder %s24, 1
      %p173 = scmp.ne.s32.totalorder %s168, %s170
      %p174 = scmp.eq.s32.totalorder %s24, 0
      %p175 = por %p173, %p174
      %p176 = scmp.ne.s32.totalorder %s168, %s170
      %p177 = scmp.eq.s32.totalorder %s29, 1
      %p178 = por %p176, %p177
      %p179 = scmp.ne.s32.totalorder %s170, %s171
      %p180 = scmp.eq.s32.totalorder %s29, 0
      %p181 = por %p179, %p180
      %p182 = scmp.ne.s32.totalorder %s170, %s171
      %p183 = scmp.eq.s32.totalorder %s30, 1
      %p184 = por %p182, %p183
      %p186 = scmp.ne.s32.totalorder %s171, %s185
      %p187 = scmp.eq.s32.totalorder %s30, 0
      %p188 = por %p186, %p187
      %s190 = sadd.s32 %s189, 1
      %p193 = scmp.eq.s32.totalorder %s24, 1
      %p194 = scmp.ne.s32.totalorder %s189, %s191
      %p195 = scmp.eq.s32.totalorder %s24, 0
      %p196 = por %p194, %p195
      %p197 = scmp.ne.s32.totalorder %s189, %s191
      %p198 = scmp.eq.s32.totalorder %s29, 1
      %p199 = por %p197, %p198
      %p200 = scmp.ne.s32.totalorder %s191, %s192
      %p201 = scmp.eq.s32.totalorder %s29, 0
      %p202 = por %p200, %p201
      %p203 = scmp.ne.s32.totalorder %s191, %s192
      %p204 = scmp.eq.s32.totalorder %s30, 1
      %p205 = por %p203, %p204
      %p207 = scmp.ne.s32.totalorder %s192, %s206
      %p208 = scmp.eq.s32.totalorder %s30, 0
      %p209 = por %p207, %p208
      %s211 = sadd.s32 %s210, 1
      %p214 = scmp.eq.s32.totalorder %s24, 1
      %p215 = scmp.ne.s32.totalorder %s210, %s212
      %p216 = scmp.eq.s32.totalorder %s24, 0
      %p217 = por %p215, %p216
      %p218 = scmp.ne.s32.totalorder %s210, %s212
      %p219 = scmp.eq.s32.totalorder %s29, 1
      %p220 = por %p218, %p219
      %p221 = scmp.ne.s32.totalorder %s212, %s213
      %p222 = scmp.eq.s32.totalorder %s29, 0
      %p223 = por %p221, %p222
      %p224 = scmp.ne.s32.totalorder %s212, %s213
      %p225 = scmp.eq.s32.totalorder %s30, 1
      %p226 = por %p224, %p225
      %p228 = scmp.ne.s32.totalorder %s213, %s227
      %p229 = scmp.eq.s32.totalorder %s30, 0
      %p230 = por %p228, %p229
      %s232 = sadd.s32 %s231, 1
      %p235 = scmp.eq.s32.totalorder %s24, 1
      %p236 = scmp.ne.s32.totalorder %s231, %s233
      %p237 = scmp.eq.s32.totalorder %s24, 0
      %p238 = por %p236, %p237
      %p239 = scmp.ne.s32.totalorder %s231, %s233
      %p240 = scmp.eq.s32.totalorder %s29, 1
      %p241 = por %p239, %p240
      %p242 = scmp.ne.s32.totalorder %s233, %s234
      %p243 = scmp.eq.s32.totalorder %s29, 0
      %p244 = por %p242, %p243
      %p245 = scmp.ne.s32.totalorder %s233, %s234
      %p246 = scmp.eq.s32.totalorder %s30, 1
      %p247 = por %p245, %p246
      %p249 = scmp.ne.s32.totalorder %s234, %s248
      %p250 = scmp.eq.s32.totalorder %s30, 0
      %p251 = por %p249, %p250
      %s252 = ssub.s32 %s24, %s31
      %p253 = scmp.eq.s32.totalorder %s252, 0
      %s255 = sadd.s32 %s254, 1
      %s256 = scalar_select %p253, %s254, %s255
      %p259 = pneg %p253
      %p260 = scmp.eq.s32.totalorder %s24, 1
      %p261 = por %p259, %p260
      %p262 = scmp.ne.s32.totalorder %s254, %s257
      %p263 = scmp.eq.s32.totalorder %s24, 0
      %p264 = por %p262, %p263
      %p265 = scmp.ne.s32.totalorder %s254, %s257
      %p266 = scmp.eq.s32.totalorder %s29, 1
      %p267 = por %p265, %p266
      %p268 = scmp.ne.s32.totalorder %s257, %s258
      %p269 = scmp.eq.s32.totalorder %s29, 0
      %p270 = por %p268, %p269
      %p271 = scmp.ne.s32.totalorder %s257, %s258
      %p272 = scmp.eq.s32.totalorder %s30, 1
      %p273 = por %p271, %p272
      %p275 = scmp.ne.s32.totalorder %s258, %s274
      %p276 = scmp.eq.s32.totalorder %s30, 0
      %p277 = por %p275, %p276
      %s278 = ssub.s32 %s24, %s31
      %p279 = scmp.eq.s32.totalorder %s278, 0
      %s281 = sadd.s32 %s280, 1
      %s282 = scalar_select %p279, %s280, %s281
      %p285 = pneg %p279
      %p286 = scmp.eq.s32.totalorder %s24, 1
      %p287 = por %p285, %p286
      %p288 = scmp.ne.s32.totalorder %s280, %s283
      %p289 = scmp.eq.s32.totalorder %s24, 0
      %p290 = por %p288, %p289
      %p291 = scmp.ne.s32.totalorder %s280, %s283
      %p292 = scmp.eq.s32.totalorder %s29, 1
      %p293 = por %p291, %p292
      %p294 = scmp.ne.s32.totalorder %s283, %s284
      %p295 = scmp.eq.s32.totalorder %s29, 0
      %p296 = por %p294, %p295
      %p297 = scmp.ne.s32.totalorder %s283, %s284
      %p298 = scmp.eq.s32.totalorder %s30, 1
      %p299 = por %p297, %p298
      %p301 = scmp.ne.s32.totalorder %s284, %s300
      %p302 = scmp.eq.s32.totalorder %s30, 0
      %p303 = por %p301, %p302
      %p304 = scmp.le.s32.totalorder 1, %s24
      %p305 = scmp.lt.s32.totalorder %s24, 3
      %p306 = pnand %p304, %p305
      %p307 = pneg %p306
      // Predicated region
      $region9: #{tpu_custom_call.1} parent=5 // pred_check
        _
      $region10: #{tpu_custom_call.1} parent=5 // pred_check_branch
        %309 = sbr.rel (%p306) target = $region12
      $region11: #{tpu_custom_call.1} parent=5 // pred_region
        %s310 = ssub.s32 %s24, 1
        // Predicated region
        $region13: #{tpu_custom_call.1} parent=11 // pred_check
          %p311 = pneg %p97
        $region14: #{tpu_custom_call.1} parent=11 // pred_check_branch
          %313 = sbr.rel (%p311) target = $region16
        $region15: #{tpu_custom_call.1} parent=11 // pred_region
          _
        $region16: #{tpu_custom_call.1} parent=11 // pred_fallthru
          _
        // Predicated region
        $region17: #{tpu_custom_call.1} parent=11 // pred_check
          %p314 = pneg %p118
        $region18: #{tpu_custom_call.1} parent=11 // pred_check_branch
          %316 = sbr.rel (%p314) target = $region20
        $region19: #{tpu_custom_call.1} parent=11 // pred_region
          _
        $region20: #{tpu_custom_call.1} parent=11 // pred_fallthru
          _
        // Predicated region
        $region21: #{tpu_custom_call.1} parent=11 // pred_check
          %p317 = pneg %p139
        $region22: #{tpu_custom_call.1} parent=11 // pred_check_branch
          %319 = sbr.rel (%p317) target = $region24
        $region23: #{tpu_custom_call.1} parent=11 // pred_region
          _
        $region24: #{tpu_custom_call.1} parent=11 // pred_fallthru
          _
        // Predicated region
        $region25: #{tpu_custom_call.1} parent=11 // pred_check
          %p320 = pneg %p160
        $region26: #{tpu_custom_call.1} parent=11 // pred_check_branch
          %322 = sbr.rel (%p320) target = $region28
        $region27: #{tpu_custom_call.1} parent=11 // pred_region
          _
        $region28: #{tpu_custom_call.1} parent=11 // pred_fallthru
          _
        // Predicated region
        $region29: #{tpu_custom_call.1} parent=11 // pred_check
          %p323 = pneg %p181
        $region30: #{tpu_custom_call.1} parent=11 // pred_check_branch
          %325 = sbr.rel (%p323) target = $region32
        $region31: #{tpu_custom_call.1} parent=11 // pred_region
          _
        $region32: #{tpu_custom_call.1} parent=11 // pred_fallthru
          _
        // Predicated region
        $region33: #{tpu_custom_call.1} parent=11 // pred_check
          %p326 = pneg %p202
        $region34: #{tpu_custom_call.1} parent=11 // pred_check_branch
          %328 = sbr.rel (%p326) target = $region36
        $region35: #{tpu_custom_call.1} parent=11 // pred_region
          _
        $region36: #{tpu_custom_call.1} parent=11 // pred_fallthru
          _
        // Predicated region
        $region37: #{tpu_custom_call.1} parent=11 // pred_check
          %p329 = pneg %p223
        $region38: #{tpu_custom_call.1} parent=11 // pred_check_branch
          %331 = sbr.rel (%p329) target = $region40
        $region39: #{tpu_custom_call.1} parent=11 // pred_region
          _
        $region40: #{tpu_custom_call.1} parent=11 // pred_fallthru
          _
        // Predicated region
        $region41: #{tpu_custom_call.1} parent=11 // pred_check
          %p332 = pneg %p244
        $region42: #{tpu_custom_call.1} parent=11 // pred_check_branch
          %334 = sbr.rel (%p332) target = $region44
        $region43: #{tpu_custom_call.1} parent=11 // pred_region
          _
        $region44: #{tpu_custom_call.1} parent=11 // pred_fallthru
          _
      $region12: #{tpu_custom_call.1} parent=5 // pred_fallthru
        _
      %p335 = scmp.lt.s32.totalorder %s24, 2
      // Predicated region
      $region45: #{tpu_custom_call.1} parent=5 // pred_check
        %p336 = pneg %p335
      $region46: #{tpu_custom_call.1} parent=5 // pred_check_branch
        %338 = sbr.rel (%p336) target = $region48
      $region47: #{tpu_custom_call.1} parent=5 // pred_region
        // Predicated region
        $region49: #{tpu_custom_call.1} parent=47 // pred_check
          %p339 = pneg %p44
        $region50: #{tpu_custom_call.1} parent=47 // pred_check_branch
          %341 = sbr.rel (%p339) target = $region52
        $region51: #{tpu_custom_call.1} parent=47 // pred_region
          %p342 = scmp.lt.s32.totalorder %s24, 1
          %s343 = scalar_select %p342, %s24, 1
          %s344 = smul.addr %s343, 4
          %s345 = scalar_lea.vmem %s0, %s344
        $region52: #{tpu_custom_call.1} parent=47 // pred_fallthru
          _
        // Predicated region
        $region53: #{tpu_custom_call.1} parent=47 // pred_check
          %p346 = pneg %p70
        $region54: #{tpu_custom_call.1} parent=47 // pred_check_branch
          %348 = sbr.rel (%p346) target = $region56
        $region55: #{tpu_custom_call.1} parent=47 // pred_region
          %p349 = scmp.lt.s32.totalorder %s24, 1
          %s350 = scalar_select %p349, %s24, 1
          %s351 = smul.addr %s350, 4
          %s352 = scalar_lea.vmem %s1, %s351
        $region56: #{tpu_custom_call.1} parent=47 // pred_fallthru
          _
      $region48: #{tpu_custom_call.1} parent=5 // pred_fallthru
        _
      %p353 = scmp.le.s32.totalorder 1, %s24
      %p354 = scmp.lt.s32.totalorder %s24, 3
      %p355 = pnand %p353, %p354
      %p356 = pneg %p355
      // Predicated region
      $region57: #{tpu_custom_call.1} parent=5 // pred_check
        _
      $region58: #{tpu_custom_call.1} parent=5 // pred_check_branch
        %358 = sbr.rel (%p355) target = $region60
      $region59: #{tpu_custom_call.1} parent=5 // pred_region
        %s359 = ssub.s32 %s24, 1
        %p360 = scmp.lt.s32.totalorder %s29, 1
        %s361 = scalar_select %p360, %s29, 1
        %s362 = smul.addr %s361, 4
        %s363 = scalar_lea.vmem %s0, %s362
        %p364 = pneg %p50
        %p365 = pneg %p47
        %p366 = scmp.lt.s32.totalorder %s29, 1
        %s367 = scalar_select %p366, %s29, 1
        %s368 = smul.addr %s367, 4
        %s369 = scalar_lea.vmem %s1, %s368
        %p370 = pneg %p76
        %p371 = pneg %p73
        %p372 = pneg %p97
        %p373 = pneg %p94
        %p374 = pneg %p118
        %p375 = pneg %p115
        %p376 = pneg %p139
        %p377 = pneg %p136
        %p378 = pneg %p160
        %p379 = pneg %p157
        %p380 = pneg %p181
        %p381 = pneg %p178
        %p382 = pneg %p202
        %p383 = pneg %p199
        %p384 = pneg %p223
        %p385 = pneg %p220
        %p386 = pneg %p244
        %p387 = pneg %p241
        %p388 = pneg %p270
        %p389 = pneg %p267
        %s390 = sand.u32 %s257, 1
        %s391 = scalar_lea.sflag [#allocation4], %s390
        %s392 = sand.u32 %s257, 1
        %s393 = smul.addr %s392, 4
        %s394 = scalar_lea.vmem [#allocation3], %s393
        %p395 = pneg %p296
        %p396 = pneg %p293
        %s397 = sand.u32 %s283, 1
        %s398 = scalar_lea.sflag [#allocation6], %s397
        %s399 = sand.u32 %s283, 1
        %s400 = smul.addr %s399, 4
        %s401 = scalar_lea.vmem [#allocation5], %s400
        %p402 = scmp.lt.s32.totalorder %s29, 1
        %s403 = scalar_select %p402, %s29, 1
        %s404 = smul.addr %s403, 4
        %s405 = scalar_lea.vmem %s0, %s404
        %p406 = scmp.lt.s32.totalorder %s29, 1
        %s407 = scalar_select %p406, %s29, 1
        %s408 = smul.addr %s407, 4
        %s409 = scalar_lea.vmem %s1, %s408
        %v410 = vld [vmem:[%s405] sm:$0xf]
        %v411 = vld [vmem:[%s409] sm:$0xf]
        %413 = vrot.lane.b32.xlu0 %v411, 2
        %v414 = vpop.permute.xlu0 %413
        %vm416 = vcmask 76816
        %417 = vst.msk [vmem:[#allocation2] sm:$0xf] %vm416, %v414
        %418 = vrot.lane.b32.xlu0 %v411, 126
        %v419 = vpop.permute.xlu0 %418
        %vm421 = vcmask 3072
        %422 = vst.msk [vmem:[#allocation2] sm:$0xf] %vm421, %v419
        %vm423 = vcmask 11272
        %424 = vst.msk [vmem:[#allocation2] sm:$0xf] %vm423, %v411
        %425 = vrot.lane.b32.xlu0 %v411, 4
        %v426 = vpop.permute.xlu0 %425
        %vm428 = vcmask 85072
        %429 = vst.msk [vmem:[#allocation2] sm:$0xf] %vm428, %v426
        %430 = vrot.lane.b32.xlu0 %v411, 6
        %v431 = vpop.permute.xlu0 %430
        %vm433 = vcmask 93272
        %434 = vst.msk [vmem:[#allocation2] sm:$0xf] %vm433, %v431
        %v435 = vld [vmem:[#allocation2] sm:$0xf]
        %v437 = vrot.slane %v435, 4
        %438 = vrot.lane.b32.xlu0 %v437, 127
        %v439 = vpop.permute.xlu0 %438
        %441 = vrot.lane.b32.xlu0 %v435, 126
        %v442 = vpop.permute.xlu0 %441
        %vm443 = vcmask 1043456
        %v444 = vsel %vm443, %v435, %v439
        %v445 = vld [vmem:[%s2] sm:$0xf]
        %v446 = vld [vmem:[%s3] sm:$0xf]
        %448 = vset.pattern.permute.xlu0 0
        %449 = vperm.xlu0 %448, %v446
        %v450 = vpop.permute.xlu0 %449
        %vm452 = vcmask 97280
        %v454 = vsel %vm452, %v445, 0
        %v456 = vsel %vm443, %v442, 0
        %458 = vmatprep.subr.mxu0 0.0
        %459 = vmatpush1.msra.mxu0 %v444
        %460 = vmatprep.subr.mxu0 0.0
        %461 = vmatpush1.msra.mxu0 %v456
        %462 = vmatprep.subr.mxu0 0.0
        %463 = vmatpush1.msra.mxu0 0.0
        %464 = vmatprep.subr.mxu0 0.0
        %465 = vmatpush1.msra.mxu0 0.0
        %466 = vmatprep.subr.mxu0 0.0
        %467 = vmatpush1.msra.mxu0 0.0
        %468 = vmatprep.subr.mxu0 0.0
        %469 = vmatpush1.msra.mxu0 0.0
        %470 = vmatprep.subr.mxu0 0.0
        %471 = vmatpush1.msra.mxu0 0.0
        %472 = vmatprep.subr.mxu0 0.0
        %473 = vmatpush1.msra.mxu0 0.0
        %474 = vmatprep.subr.mxu0 0.0
        %475 = vmatpush1.msra.mxu0 0.0
        %476 = vmatprep.subr.mxu0 0.0
        %477 = vmatpush1.msra.mxu0 0.0
        %478 = vmatprep.subr.mxu0 0.0
        %479 = vmatpush1.msra.mxu0 0.0
        %480 = vmatprep.subr.mxu0 0.0
        %481 = vmatpush1.msra.mxu0 0.0
        %482 = vmatprep.subr.mxu0 0.0
        %483 = vmatpush1.msra.mxu0 0.0
        %484 = vmatprep.subr.mxu0 0.0
        %485 = vmatpush1.msra.mxu0 0.0
        %486 = vmatprep.subr.mxu0 0.0
        %487 = vmatpush1.msra.mxu0 0.0
        %488 = vmatprep.subr.mxu0 0.0
        %489 = vmatpush1.msra.mxu0 0.0
        %490 = vmatprep.subr.mxu0 0.0
        %491 = vmatpush1.msra.mxu0 0.0
        %492 = vmatprep.subr.mxu0 0.0
        %493 = vmatpush1.msra.mxu0 0.0
        %494 = vmatprep.subr.mxu0 0.0
        %495 = vmatpush1.msra.mxu0 0.0
        %496 = vmatprep.subr.mxu0 0.0
        %497 = vmatpush1.msra.mxu0 0.0
        %498 = vmatprep.subr.mxu0 0.0
        %499 = vmatpush1.msra.mxu0 0.0
        %500 = vmatprep.subr.mxu0 0.0
        %501 = vmatpush1.msra.mxu0 0.0
        %502 = vmatprep.subr.mxu0 0.0
        %503 = vmatpush1.msra.mxu0 0.0
        %504 = vmatprep.subr.mxu0 0.0
        %505 = vmatpush1.msra.mxu0 0.0
        %506 = vmatprep.subr.mxu0 0.0
        %507 = vmatpush1.msra.mxu0 0.0
        %508 = vmatprep.subr.mxu0 0.0
        %509 = vmatpush1.msra.mxu0 0.0
        %510 = vmatprep.subr.mxu0 0.0
        %511 = vmatpush1.msra.mxu0 0.0
        %512 = vmatprep.subr.mxu0 0.0
        %513 = vmatpush1.msra.mxu0 0.0
        %514 = vmatprep.subr.mxu0 0.0
        %515 = vmatpush1.msra.mxu0 0.0
        %516 = vmatprep.subr.mxu0 0.0
        %517 = vmatpush1.msra.mxu0 0.0
        %518 = vmatprep.subr.mxu0 0.0
        %519 = vmatpush1.msra.mxu0 0.0
        %520 = vmatprep.subr.mxu0 0.0
        %521 = vmatpush1.msra.mxu0 0.0
        %522 = vmatprep.mubr.f32.mxu0 0.0
        %523 = vmatmul.mubr.f32.gmra.mrb[0].mxu0 %v454
        %v524 = vpop.f32.mrb[0].mxu0
        %v525 = vadd.f32 %v450, %v524
        %v526 = vpop.f32.mrb[0].mxu0
        %527 = vdwg.mxu0
        %vm528 = vcmp.gt.f32.partialorder %v525, 0.0
        %v529 = vmul.f32 %v525, 0.01
        %v530 = vsel %vm528, %v525, %v529
        %v532 = vrot.slane %v530, 4
        %533 = vrot.lane.b32.xlu0 %v532, 127
        %v534 = vpop.permute.xlu0 %533
        %536 = vrot.lane.b32.xlu0 %v530, 126
        %v537 = vpop.permute.xlu0 %536
        %v538 = vsel %vm443, %v530, %v534
        %v539 = vld [vmem:[%s4] sm:$0xf]
        %v540 = vld [vmem:[%s5] sm:$0xf]
        %542 = vset.pattern.permute.xlu0 0
        %543 = vperm.xlu0 %542, %v540
        %v544 = vpop.permute.xlu0 %543
        %v547 = vsel %vm452, %v539, 0
        %v549 = vsel %vm443, %v537, 0
        %551 = vmatprep.subr.mxu0 0.0
        %552 = vmatpush1.msra.mxu0 %v538
        %553 = vmatprep.subr.mxu0 0.0
        %554 = vmatpush1.msra.mxu0 %v549
        %555 = vmatprep.subr.mxu0 0.0
        %556 = vmatpush1.msra.mxu0 0.0
        %557 = vmatprep.subr.mxu0 0.0
        %558 = vmatpush1.msra.mxu0 0.0
        %559 = vmatprep.subr.mxu0 0.0
        %560 = vmatpush1.msra.mxu0 0.0
        %561 = vmatprep.subr.mxu0 0.0
        %562 = vmatpush1.msra.mxu0 0.0
        %563 = vmatprep.subr.mxu0 0.0
        %564 = vmatpush1.msra.mxu0 0.0
        %565 = vmatprep.subr.mxu0 0.0
        %566 = vmatpush1.msra.mxu0 0.0
        %567 = vmatprep.subr.mxu0 0.0
        %568 = vmatpush1.msra.mxu0 0.0
        %569 = vmatprep.subr.mxu0 0.0
        %570 = vmatpush1.msra.mxu0 0.0
        %571 = vmatprep.subr.mxu0 0.0
        %572 = vmatpush1.msra.mxu0 0.0
        %573 = vmatprep.subr.mxu0 0.0
        %574 = vmatpush1.msra.mxu0 0.0
        %575 = vmatprep.subr.mxu0 0.0
        %576 = vmatpush1.msra.mxu0 0.0
        %577 = vmatprep.subr.mxu0 0.0
        %578 = vmatpush1.msra.mxu0 0.0
        %579 = vmatprep.subr.mxu0 0.0
        %580 = vmatpush1.msra.mxu0 0.0
        %581 = vmatprep.subr.mxu0 0.0
        %582 = vmatpush1.msra.mxu0 0.0
        %583 = vmatprep.subr.mxu0 0.0
        %584 = vmatpush1.msra.mxu0 0.0
        %585 = vmatprep.subr.mxu0 0.0
        %586 = vmatpush1.msra.mxu0 0.0
        %587 = vmatprep.subr.mxu0 0.0
        %588 = vmatpush1.msra.mxu0 0.0
        %589 = vmatprep.subr.mxu0 0.0
        %590 = vmatpush1.msra.mxu0 0.0
        %591 = vmatprep.subr.mxu0 0.0
        %592 = vmatpush1.msra.mxu0 0.0
        %593 = vmatprep.subr.mxu0 0.0
        %594 = vmatpush1.msra.mxu0 0.0
        %595 = vmatprep.subr.mxu0 0.0
        %596 = vmatpush1.msra.mxu0 0.0
        %597 = vmatprep.subr.mxu0 0.0
        %598 = vmatpush1.msra.mxu0 0.0
        %599 = vmatprep.subr.mxu0 0.0
        %600 = vmatpush1.msra.mxu0 0.0
        %601 = vmatprep.subr.mxu0 0.0
        %602 = vmatpush1.msra.mxu0 0.0
        %603 = vmatprep.subr.mxu0 0.0
        %604 = vmatpush1.msra.mxu0 0.0
        %605 = vmatprep.subr.mxu0 0.0
        %606 = vmatpush1.msra.mxu0 0.0
        %607 = vmatprep.subr.mxu0 0.0
        %608 = vmatpush1.msra.mxu0 0.0
        %609 = vmatprep.subr.mxu0 0.0
        %610 = vmatpush1.msra.mxu0 0.0
        %611 = vmatprep.subr.mxu0 0.0
        %612 = vmatpush1.msra.mxu0 0.0
        %613 = vmatprep.subr.mxu0 0.0
        %614 = vmatpush1.msra.mxu0 0.0
        %615 = vmatprep.mubr.f32.mxu0 0.0
        %616 = vmatmul.mubr.f32.gmra.mrb[0].mxu0 %v547
        %v617 = vpop.f32.mrb[0].mxu0
        %v618 = vadd.f32 %v544, %v617
        %v619 = vpop.f32.mrb[0].mxu0
        %620 = vdwg.mxu0
        %v621 = vtanh.pop %v618
        %v622 = vadd.f32 %v410, %v621
        %624 = vrot.lane.b32.xlu0 %v622, 2
        %v625 = vpop.permute.xlu0 %624
        %627 = vst.msk [vmem:[#allocation2] sm:$0xf] %vm416, %v625
        %628 = vrot.lane.b32.xlu0 %v622, 126
        %v629 = vpop.permute.xlu0 %628
        %631 = vst.msk [vmem:[#allocation2] sm:$0xf] %vm421, %v629
        %632 = vst.msk [vmem:[#allocation2] sm:$0xf] %vm423, %v622
        %633 = vrot.lane.b32.xlu0 %v622, 4
        %v634 = vpop.permute.xlu0 %633
        %636 = vst.msk [vmem:[#allocation2] sm:$0xf] %vm428, %v634
        %637 = vrot.lane.b32.xlu0 %v622, 6
        %v638 = vpop.permute.xlu0 %637
        %640 = vst.msk [vmem:[#allocation2] sm:$0xf] %vm433, %v638
        %v641 = vld [vmem:[#allocation2] sm:$0xf]
        %v643 = vrot.slane %v641, 4
        %644 = vrot.lane.b32.xlu0 %v643, 127
        %v645 = vpop.permute.xlu0 %644
        %647 = vrot.lane.b32.xlu0 %v641, 126
        %v648 = vpop.permute.xlu0 %647
        %v649 = vsel %vm443, %v641, %v645
        %v650 = vld [vmem:[%s6] sm:$0xf]
        %v651 = vld [vmem:[%s7] sm:$0xf]
        %653 = vset.pattern.permute.xlu0 0
        %654 = vperm.xlu0 %653, %v651
        %v655 = vpop.permute.xlu0 %654
        %v658 = vsel %vm452, %v650, 0
        %v660 = vsel %vm443, %v648, 0
        %662 = vmatprep.subr.mxu0 0.0
        %663 = vmatpush1.msra.mxu0 %v649
        %664 = vmatprep.subr.mxu0 0.0
        %665 = vmatpush1.msra.mxu0 %v660
        %666 = vmatprep.subr.mxu0 0.0
        %667 = vmatpush1.msra.mxu0 0.0
        %668 = vmatprep.subr.mxu0 0.0
        %669 = vmatpush1.msra.mxu0 0.0
        %670 = vmatprep.subr.mxu0 0.0
        %671 = vmatpush1.msra.mxu0 0.0
        %672 = vmatprep.subr.mxu0 0.0
        %673 = vmatpush1.msra.mxu0 0.0
        %674 = vmatprep.subr.mxu0 0.0
        %675 = vmatpush1.msra.mxu0 0.0
        %676 = vmatprep.subr.mxu0 0.0
        %677 = vmatpush1.msra.mxu0 0.0
        %678 = vmatprep.subr.mxu0 0.0
        %679 = vmatpush1.msra.mxu0 0.0
        %680 = vmatprep.subr.mxu0 0.0
        %681 = vmatpush1.msra.mxu0 0.0
        %682 = vmatprep.subr.mxu0 0.0
        %683 = vmatpush1.msra.mxu0 0.0
        %684 = vmatprep.subr.mxu0 0.0
        %685 = vmatpush1.msra.mxu0 0.0
        %686 = vmatprep.subr.mxu0 0.0
        %687 = vmatpush1.msra.mxu0 0.0
        %688 = vmatprep.subr.mxu0 0.0
        %689 = vmatpush1.msra.mxu0 0.0
        %690 = vmatprep.subr.mxu0 0.0
        %691 = vmatpush1.msra.mxu0 0.0
        %692 = vmatprep.subr.mxu0 0.0
        %693 = vmatpush1.msra.mxu0 0.0
        %694 = vmatprep.subr.mxu0 0.0
        %695 = vmatpush1.msra.mxu0 0.0
        %696 = vmatprep.subr.mxu0 0.0
        %697 = vmatpush1.msra.mxu0 0.0
        %698 = vmatprep.subr.mxu0 0.0
        %699 = vmatpush1.msra.mxu0 0.0
        %700 = vmatprep.subr.mxu0 0.0
        %701 = vmatpush1.msra.mxu0 0.0
        %702 = vmatprep.subr.mxu0 0.0
        %703 = vmatpush1.msra.mxu0 0.0
        %704 = vmatprep.subr.mxu0 0.0
        %705 = vmatpush1.msra.mxu0 0.0
        %706 = vmatprep.subr.mxu0 0.0
        %707 = vmatpush1.msra.mxu0 0.0
        %708 = vmatprep.subr.mxu0 0.0
        %709 = vmatpush1.msra.mxu0 0.0
        %710 = vmatprep.subr.mxu0 0.0
        %711 = vmatpush1.msra.mxu0 0.0
        %712 = vmatprep.subr.mxu0 0.0
        %713 = vmatpush1.msra.mxu0 0.0
        %714 = vmatprep.subr.mxu0 0.0
        %715 = vmatpush1.msra.mxu0 0.0
        %716 = vmatprep.subr.mxu0 0.0
        %717 = vmatpush1.msra.mxu0 0.0
        %718 = vmatprep.subr.mxu0 0.0
        %719 = vmatpush1.msra.mxu0 0.0
        %720 = vmatprep.subr.mxu0 0.0
        %721 = vmatpush1.msra.mxu0 0.0
        %722 = vmatprep.subr.mxu0 0.0
        %723 = vmatpush1.msra.mxu0 0.0
        %724 = vmatprep.subr.mxu0 0.0
        %725 = vmatpush1.msra.mxu0 0.0
        %726 = vmatprep.mubr.f32.mxu0 0.0
        %727 = vmatmul.mubr.f32.gmra.mrb[0].mxu0 %v658
        %v728 = vpop.f32.mrb[0].mxu0
        %v729 = vadd.f32 %v655, %v728
        %v730 = vpop.f32.mrb[0].mxu0
        %731 = vdwg.mxu0
        %vm732 = vcmp.gt.f32.partialorder %v729, 0.0
        %v733 = vmul.f32 %v729, 0.01
        %v734 = vsel %vm732, %v729, %v733
        %v736 = vrot.slane %v734, 4
        %737 = vrot.lane.b32.xlu0 %v736, 127
        %v738 = vpop.permute.xlu0 %737
        %740 = vrot.lane.b32.xlu0 %v734, 126
        %v741 = vpop.permute.xlu0 %740
        %v742 = vsel %vm443, %v734, %v738
        %v743 = vld [vmem:[%s8] sm:$0xf]
        %v744 = vld [vmem:[%s9] sm:$0xf]
        %746 = vset.pattern.permute.xlu0 0
        %747 = vperm.xlu0 %746, %v744
        %v748 = vpop.permute.xlu0 %747
        %v751 = vsel %vm452, %v743, 0
        %v753 = vsel %vm443, %v741, 0
        %755 = vmatprep.subr.mxu0 0.0
        %756 = vmatpush1.msra.mxu0 %v742
        %757 = vmatprep.subr.mxu0 0.0
        %758 = vmatpush1.msra.mxu0 %v753
        %759 = vmatprep.subr.mxu0 0.0
        %760 = vmatpush1.msra.mxu0 0.0
        %761 = vmatprep.subr.mxu0 0.0
        %762 = vmatpush1.msra.mxu0 0.0
        %763 = vmatprep.subr.mxu0 0.0
        %764 = vmatpush1.msra.mxu0 0.0
        %765 = vmatprep.subr.mxu0 0.0
        %766 = vmatpush1.msra.mxu0 0.0
        %767 = vmatprep.subr.mxu0 0.0
        %768 = vmatpush1.msra.mxu0 0.0
        %769 = vmatprep.subr.mxu0 0.0
        %770 = vmatpush1.msra.mxu0 0.0
        %771 = vmatprep.subr.mxu0 0.0
        %772 = vmatpush1.msra.mxu0 0.0
        %773 = vmatprep.subr.mxu0 0.0
        %774 = vmatpush1.msra.mxu0 0.0
        %775 = vmatprep.subr.mxu0 0.0
        %776 = vmatpush1.msra.mxu0 0.0
        %777 = vmatprep.subr.mxu0 0.0
        %778 = vmatpush1.msra.mxu0 0.0
        %779 = vmatprep.subr.mxu0 0.0
        %780 = vmatpush1.msra.mxu0 0.0
        %781 = vmatprep.subr.mxu0 0.0
        %782 = vmatpush1.msra.mxu0 0.0
        %783 = vmatprep.subr.mxu0 0.0
        %784 = vmatpush1.msra.mxu0 0.0
        %785 = vmatprep.subr.mxu0 0.0
        %786 = vmatpush1.msra.mxu0 0.0
        %787 = vmatprep.subr.mxu0 0.0
        %788 = vmatpush1.msra.mxu0 0.0
        %789 = vmatprep.subr.mxu0 0.0
        %790 = vmatpush1.msra.mxu0 0.0
        %791 = vmatprep.subr.mxu0 0.0
        %792 = vmatpush1.msra.mxu0 0.0
        %793 = vmatprep.subr.mxu0 0.0
        %794 = vmatpush1.msra.mxu0 0.0
        %795 = vmatprep.subr.mxu0 0.0
        %796 = vmatpush1.msra.mxu0 0.0
        %797 = vmatprep.subr.mxu0 0.0
        %798 = vmatpush1.msra.mxu0 0.0
        %799 = vmatprep.subr.mxu0 0.0
        %800 = vmatpush1.msra.mxu0 0.0
        %801 = vmatprep.subr.mxu0 0.0
        %802 = vmatpush1.msra.mxu0 0.0
        %803 = vmatprep.subr.mxu0 0.0
        %804 = vmatpush1.msra.mxu0 0.0
        %805 = vmatprep.subr.mxu0 0.0
        %806 = vmatpush1.msra.mxu0 0.0
        %807 = vmatprep.subr.mxu0 0.0
        %808 = vmatpush1.msra.mxu0 0.0
        %809 = vmatprep.subr.mxu0 0.0
        %810 = vmatpush1.msra.mxu0 0.0
        %811 = vmatprep.subr.mxu0 0.0
        %812 = vmatpush1.msra.mxu0 0.0
        %813 = vmatprep.subr.mxu0 0.0
        %814 = vmatpush1.msra.mxu0 0.0
        %815 = vmatprep.subr.mxu0 0.0
        %816 = vmatpush1.msra.mxu0 0.0
        %817 = vmatprep.subr.mxu0 0.0
        %818 = vmatpush1.msra.mxu0 0.0
        %819 = vmatprep.mubr.f32.mxu0 0.0
        %820 = vmatmul.mubr.f32.gmra.mrb[0].mxu0 %v751
        %v821 = vpop.f32.mrb[0].mxu0
        %v822 = vadd.f32 %v748, %v821
        %v823 = vpop.f32.mrb[0].mxu0
        %824 = vdwg.mxu0
        %v825 = vtanh.pop %v822
        %v826 = vsub.f32 %v411, %v825
        %vm827 = vcmask 60416
        %828 = vst.msk [vmem:[%s394] sm:$0xf] %vm827, %v622
        %829 = vst.msk [vmem:[%s401] sm:$0xf] %vm827, %v826
        %s830 = sand.u32 %s257, 1
        %s831 = scalar_lea.sflag [#allocation4], %s830
        %s832 = sand.u32 %s257, 1
        %s833 = smul.addr %s832, 4
        %s834 = scalar_lea.vmem [#allocation3], %s833
        %s835 = sand.u32 %s283, 1
        %s836 = scalar_lea.sflag [#allocation6], %s835
        %s837 = sand.u32 %s283, 1
        %s838 = smul.addr %s837, 4
        %s839 = scalar_lea.vmem [#allocation5], %s838
        // Predicated region
        $region61: #{tpu_custom_call.1} parent=59 // pred_check
          %p840 = pneg %p267
        $region62: #{tpu_custom_call.1} parent=59 // pred_check_branch
          %842 = sbr.rel (%p840) target = $region64
        $region63: #{tpu_custom_call.1} parent=59 // pred_region
          %s844 = ssub.s32 64, 64
          %845 = vsyncadd %s831, %s844
          %s846 = smul.addr %s29, 64
          %s847 = scalar_lea.hbm %s10, %s846
          %s849 = sshll.u32 %s834, 4
          %s850 = int_to_ptr.vmem [resolvable:$true] %s849
          %852 = dma.vmem_to_hbm [thread:$0]  %s850, 64, %s847, %s831
        $region64: #{tpu_custom_call.1} parent=59 // pred_fallthru
          _
        // Predicated region
        $region65: #{tpu_custom_call.1} parent=59 // pred_check
          %p853 = pneg %p293
        $region66: #{tpu_custom_call.1} parent=59 // pred_check_branch
          %855 = sbr.rel (%p853) target = $region68
        $region67: #{tpu_custom_call.1} parent=59 // pred_region
          %s857 = ssub.s32 64, 64
          %858 = vsyncadd %s836, %s857
          %s859 = smul.addr %s29, 64
          %s860 = scalar_lea.hbm %s11, %s859
          %s862 = sshll.u32 %s839, 4
          %s863 = int_to_ptr.vmem [resolvable:$true] %s862
          %865 = dma.vmem_to_hbm [thread:$0]  %s863, 64, %s860, %s836
        $region68: #{tpu_custom_call.1} parent=59 // pred_fallthru
          _
      $region60: #{tpu_custom_call.1} parent=5 // pred_fallthru
        _
      %p866 = scmp.le.s32.totalorder 2, %s24
      // Predicated region
      $region69: #{tpu_custom_call.1} parent=5 // pred_check
        %p867 = pneg %p866
      $region70: #{tpu_custom_call.1} parent=5 // pred_check_branch
        %869 = sbr.rel (%p867) target = $region72
      $region71: #{tpu_custom_call.1} parent=5 // pred_region
        %s870 = ssub.s32 %s24, 2
        // Predicated region
        $region73: #{tpu_custom_call.1} parent=71 // pred_check
          %p871 = pneg %p273
        $region74: #{tpu_custom_call.1} parent=71 // pred_check_branch
          %873 = sbr.rel (%p871) target = $region76
        $region75: #{tpu_custom_call.1} parent=71 // pred_region
          %s874 = sand.u32 %s258, 1
          %s875 = scalar_lea.sflag [#allocation4], %s874
          %s876 = sand.u32 %s258, 1
          %s877 = smul.addr %s876, 4
          %s878 = scalar_lea.vmem [#allocation3], %s877
          %879 = dma.done %s875, 64
        $region76: #{tpu_custom_call.1} parent=71 // pred_fallthru
          _
        // Predicated region
        $region77: #{tpu_custom_call.1} parent=71 // pred_check
          %p880 = pneg %p299
        $region78: #{tpu_custom_call.1} parent=71 // pred_check_branch
          %882 = sbr.rel (%p880) target = $region80
        $region79: #{tpu_custom_call.1} parent=71 // pred_region
          %s883 = sand.u32 %s284, 1
          %s884 = scalar_lea.sflag [#allocation6], %s883
          %s885 = sand.u32 %s284, 1
          %s886 = smul.addr %s885, 4
          %s887 = scalar_lea.vmem [#allocation5], %s886
          %888 = dma.done %s884, 64
        $region80: #{tpu_custom_call.1} parent=71 // pred_fallthru
          _
      $region72: #{tpu_custom_call.1} parent=5 // pred_fallthru
        _
    $region6: #{tpu_custom_call.1} parent=1 // loop_footer
      %s28 = sadd.s32 1, %s24
    $region7: #{tpu_custom_call.1} parent=1 // loop_footer_branch
      %23 = sbr.rel target = $region3
    $region8: #{tpu_custom_call.1} parent=1 // loop_exit
      _
    %889 = vsyncpa [#allocation4], 1
    %s890 = scalar_lea.sflag [#allocation4], 1
    %891 = vsyncpa %s890, 1
    %892 = vsyncpa [#allocation6], 1
    %s893 = scalar_lea.sflag [#allocation6], 1
    %894 = vsyncpa %s893, 1

</llo_original>
